<compile_context>
chip_gen: v7x
topology: tpu7x:2x2x1
jax: 0.10.0
libtpu: 0.0.40
codegen_flags: <defaults>
</compile_context>

<pallas_src>
import functools

import jax
import jax.numpy as jnp
from jax.experimental import pallas as pl
from jax.experimental.pallas import tpu as pltpu


def _planar_flow_kernel(w_ref, u_ref, scal_ref, z_ref, znew_ref, ldj_ref,
                        *, dim, tile_cols, cols_total, n_valid, masked):
    """One (dim, 8, tile_cols) lane-dense tile of the batch.

    w_ref, u_ref: (dim,) f32 SMEM (scalar prefetch).
    scal_ref:     (2,)   f32 SMEM = [b, u.w] (u.w precomputed in the wrapper).
    z_ref, znew_ref: (dim, 8, tile_cols) f32 VMEM blocks.
    ldj_ref: (1, 1) f32 output block revisited across the grid (accumulator).
    """
    i = pl.program_id(0)

    @pl.when(i == 0)
    def _init():
        ldj_ref[...] = jnp.zeros_like(ldj_ref)

    z = z_ref[...]                                        # (dim, 8, tile_cols)

    # linear = z @ w.T + b  ->  (8, tile_cols): dim full-vreg MACs on the VPU.
    linear = z[0] * w_ref[0]
    for d in range(1, dim):
        linear = linear + z[d] * w_ref[d]
    linear = linear + scal_ref[0]
    act = jnp.tanh(linear)                                # (8, tile_cols), EUP

    # z_new = z + u * act : one full-occupancy (8, tile_cols) store per feature.
    for d in range(dim):
        znew_ref[d] = z[d] + u_ref[d] * act

    # u @ psi.T folded per column: 1 + (1 - act^2) * (u . w).
    inner = 1.0 + (1.0 - act * act) * scal_ref[1]
    log_det = jnp.log(jnp.abs(inner))                     # (8, tile_cols)

    if masked:
        # Zero contributions of zero-padded batch columns. Element (r, c) of
        # this tile is flat batch index r*cols_total + i*tile_cols + c.
        row = jax.lax.broadcasted_iota(jnp.int32, (8, tile_cols), 0)
        col = jax.lax.broadcasted_iota(jnp.int32, (8, tile_cols), 1)
        flat = row * cols_total + (col + i * tile_cols)
        log_det = jnp.where(flat < n_valid, log_det, 0.0)

    ldj_ref[...] += jnp.sum(log_det, keepdims=True)       # (1, 1)


def planar_flow(z, w, u, b, *, tile_cols=16384):
    """z: (N, dim) f32; w, u: (1, dim) f32; b: (1,) f32.

    Returns (z_new (N, dim), log_det_jacobian_sum (1, 1)).
    """
    z = jnp.asarray(z, jnp.float32)
    N, dim = z.shape

    # --- tile sizing (lane axis = batch/8) ---------------------------------
    # tile_cols=16384 -> 131072 batch cols/tile, ~2.6 MB/block; in+out double
    # buffered ~10.5 MB, fits v5e's 16 MiB default scoped VMEM.  Cap at 65536
    # (~42 MB pipelined) so it always fits v7x's 64 MiB physical VMEM.
    tile_cols = max(128, min((int(tile_cols) // 128) * 128, 65536))
    cols_min = pl.cdiv(pl.cdiv(N, 8), 128) * 128          # lane-aligned minimum
    tile_cols = min(tile_cols, cols_min)
    num_tiles = pl.cdiv(cols_min, tile_cols)
    # Rebalance so padding overshoot stays < 128 lanes per tile.
    tile_cols = pl.cdiv(pl.cdiv(cols_min, num_tiles), 128) * 128
    cols_total = num_tiles * tile_cols
    n_pad = 8 * cols_total

    # Lane-dense layout: (N, dim) -> (dim, N) -> pad -> (dim, 8, cols_total).
    # The trailing row-major reshape is free; transpose+pad stream once.
    zt = jnp.pad(z.T, ((0, 0), (0, n_pad - N))).reshape(dim, 8, cols_total)

    w_s = jnp.asarray(w, jnp.float32).reshape(dim)
    u_s = jnp.asarray(u, jnp.float32).reshape(dim)
    b_s = jnp.asarray(b, jnp.float32).reshape(())
    scal = jnp.stack([b_s, jnp.sum(u_s * w_s)])           # [b, u.w] -> SMEM

    kernel = functools.partial(
        _planar_flow_kernel, dim=dim, tile_cols=tile_cols,
        cols_total=cols_total, n_valid=N, masked=(n_pad != N))

    block_bytes = dim * 8 * tile_cols * 4
    vmem_limit = int(min(max(4 * block_bytes + (4 << 20), 32 << 20), 64 << 20))

    cost = pl.CostEstimate(
        flops=int((4 * dim + 10) * max(N, 1)),
        transcendentals=int(2 * max(N, 1)),
        bytes_accessed=int(2 * 4 * dim * n_pad + 4 * (2 * dim + 2)))

    znew_t, ldj = pl.pallas_call(
        kernel,
        out_shape=(
            jax.ShapeDtypeStruct((dim, 8, cols_total), jnp.float32),
            jax.ShapeDtypeStruct((1, 1), jnp.float32),
        ),
        grid_spec=pltpu.PrefetchScalarGridSpec(
            num_scalar_prefetch=3,                         # w, u, [b, u.w]
            grid=(num_tiles,),
            in_specs=[
                pl.BlockSpec((dim, 8, tile_cols), lambda i, w, u, s: (0, 0, i)),
            ],
            out_specs=(
                pl.BlockSpec((dim, 8, tile_cols), lambda i, w, u, s: (0, 0, i)),
                # Same block every step -> resident accumulator across tiles.
                pl.BlockSpec((1, 1), lambda i, w, u, s: (0, 0)),
            ),
        ),
        compiler_params=pltpu.CompilerParams(
            # Grid axis carries the log-det reduction -> keep it sequential.
            dimension_semantics=("arbitrary",),
            vmem_limit_bytes=vmem_limit,
        ),
        cost_estimate=cost,
    )(w_s, u_s, scal, zt)

    z_new = znew_t.reshape(dim, n_pad)[:, :N].T            # back to (N, dim)
    return z_new, ldj


def planar_flow_ref(z, w, u, b):
    linear = z @ w.T + b                                    # (N, 1)
    activation = jnp.tanh(linear)                           # (N, 1)
    psi = (1.0 - activation**2) * w                         # (N, dim)
    z_new = z + u * activation                              # (N, dim)
    ldj = jnp.log(jnp.abs(1.0 + u @ psi.T))                 # (1, N)
    return z_new, jnp.sum(ldj, axis=1, keepdims=True)       # (1, 1)


if __name__ == "__main__":
    dim = 5
    key = jax.random.PRNGKey(0)
    kz, kw, ku, kb, kz2 = jax.random.split(key, 5)

    # Deterministic parameters (mirror torch.randn shapes from __init__).
    w = jax.random.normal(kw, (1, dim), dtype=jnp.float32)
    u = jax.random.normal(ku, (1, dim), dtype=jnp.float32)
    b = jax.random.normal(kb, (1,), dtype=jnp.float32)

    # Case 1: tiny batch (single tile, heavy padding + masking path).
    z_small = jax.random.normal(kz, (8, dim), dtype=jnp.float32)
    zn_s, ldj_s = planar_flow(z_small, w, u, b)
    jax.block_until_ready((zn_s, ldj_s))
    zn_s_ref, ldj_s_ref = planar_flow_ref(z_small, w, u, b)
    assert zn_s.shape == (8, dim) and ldj_s.shape == (1, 1)
    assert jnp.allclose(zn_s, zn_s_ref, atol=1e-5, rtol=1e-5)
    assert jnp.allclose(ldj_s, ldj_s_ref, atol=1e-4, rtol=1e-4)

    # Case 2: larger ragged batch with a small tile -> multi-tile grid
    # (exercises pipelining, padded-column masking, cross-tile accumulation).
    z_big = jax.random.normal(kz2, (3000, dim), dtype=jnp.float32)
    zn_b, ldj_b = planar_flow(z_big, w, u, b, tile_cols=128)
    jax.block_until_ready((zn_b, ldj_b))
    zn_b_ref, ldj_b_ref = planar_flow_ref(z_big, w, u, b)
    assert zn_b.shape == (3000, dim) and ldj_b.shape == (1, 1)
    assert jnp.allclose(zn_b, zn_b_ref, atol=1e-5, rtol=1e-5)
    assert jnp.allclose(ldj_b, ldj_b_ref, atol=1e-4, rtol=1e-4)

    print("KERNEL_OK")
</pallas_src>

<mosaic_0001>
module attributes {stable_mosaic.version = 11 : i64} {
  func.func @_planar_flow_kernel(%arg0: i32, %arg1: memref<5xf32, #tpu.memory_space<smem>>, %arg2: memref<5xf32, #tpu.memory_space<smem>>, %arg3: memref<2xf32, #tpu.memory_space<smem>>, %arg4: memref<5x8x128xf32, #tpu.memory_space<vmem>>, %arg5: memref<5x8x128xf32, #tpu.memory_space<vmem>>, %arg6: memref<1x1xf32, #tpu.memory_space<vmem>>) attributes {dimension_semantics = [#tpu.dimension_semantics<arbitrary>], iteration_bounds = array<i64: 1>, scalar_prefetch = 3 : i64, scratch_operands = 0 : i64, tpu.core_type = #tpu.core_type<tc>, window_params = [{transform_indices = @transform_0, window_bounds = array<i64: 5, 8, 128>}, {transform_indices = @transform_1, window_bounds = array<i64: 5, 8, 128>}, {pipeline_mode = #tpu.pipeline_mode<synchronous>, transform_indices = @transform_2, window_bounds = array<i64: 1, 1>}]} {
    %c0_i32 = arith.constant 0 : i32
    %0 = arith.cmpi eq, %arg0, %c0_i32 : i32
    %1 = arith.extui %0 : i1 to i32
    %c0_i32_0 = arith.constant 0 : i32
    %2 = arith.cmpi ne, %1, %c0_i32_0 : i32
    scf.if %2 {
      %cst_34 = arith.constant 0.000000e+00 : f32
      %112 = vector.broadcast %cst_34 : f32 to vector<1x1xf32>
      %c0_35 = arith.constant 0 : index
      %c0_36 = arith.constant 0 : index
      %113 = vector.load %arg6[%c0_35, %c0_36] : memref<1x1xf32, #tpu.memory_space<vmem>>, vector<1x1xf32>
      tpu.vector_store %arg6[%c0_35, %c0_36], %112 {strides = array<i32>} : memref<1x1xf32, #tpu.memory_space<vmem>>, vector<1x1xf32>,
    } else {
    }
    %c0 = arith.constant 0 : index
    %c0_1 = arith.constant 0 : index
    %c0_2 = arith.constant 0 : index
    %3 = vector.load %arg4[%c0, %c0_1, %c0_2] : memref<5x8x128xf32, #tpu.memory_space<vmem>>, vector<5x8x128xf32>
    %4 = vector.extract_strided_slice %3 {offsets = [0, 0, 0], sizes = [1, 8, 128], strides = [1, 1, 1]} : vector<5x8x128xf32> to vector<1x8x128xf32>
    %5 = vector.shape_cast %4 : vector<1x8x128xf32> to vector<8x128xf32>
    %c0_3 = arith.constant 0 : index
    %6 = memref.load %arg1[%c0_3] : memref<5xf32, #tpu.memory_space<smem>>
    %7 = vector.broadcast %6 : f32 to vector<8x128xf32>
    %8 = arith.mulf %5, %7 : vector<8x128xf32>
    %9 = vector.extract_strided_slice %3 {offsets = [1, 0, 0], sizes = [1, 8, 128], strides = [1, 1, 1]} : vector<5x8x128xf32> to vector<1x8x128xf32>
    %10 = vector.shape_cast %9 : vector<1x8x128xf32> to vector<8x128xf32>
    %c1 = arith.constant 1 : index
    %11 = memref.load %arg1[%c1] : memref<5xf32, #tpu.memory_space<smem>>
    %12 = vector.broadcast %11 : f32 to vector<8x128xf32>
    %13 = arith.mulf %10, %12 : vector<8x128xf32>
    %14 = arith.addf %8, %13 : vector<8x128xf32>
    %15 = vector.extract_strided_slice %3 {offsets = [2, 0, 0], sizes = [1, 8, 128], strides = [1, 1, 1]} : vector<5x8x128xf32> to vector<1x8x128xf32>
    %16 = vector.shape_cast %15 : vector<1x8x128xf32> to vector<8x128xf32>
    %c2 = arith.constant 2 : index
    %17 = memref.load %arg1[%c2] : memref<5xf32, #tpu.memory_space<smem>>
    %18 = vector.broadcast %17 : f32 to vector<8x128xf32>
    %19 = arith.mulf %16, %18 : vector<8x128xf32>
    %20 = arith.addf %14, %19 : vector<8x128xf32>
    %21 = vector.extract_strided_slice %3 {offsets = [3, 0, 0], sizes = [1, 8, 128], strides = [1, 1, 1]} : vector<5x8x128xf32> to vector<1x8x128xf32>
    %22 = vector.shape_cast %21 : vector<1x8x128xf32> to vector<8x128xf32>
    %c3 = arith.constant 3 : index
    %23 = memref.load %arg1[%c3] : memref<5xf32, #tpu.memory_space<smem>>
    %24 = vector.broadcast %23 : f32 to vector<8x128xf32>
    %25 = arith.mulf %22, %24 : vector<8x128xf32>
    %26 = arith.addf %20, %25 : vector<8x128xf32>
    %27 = vector.extract_strided_slice %3 {offsets = [4, 0, 0], sizes = [1, 8, 128], strides = [1, 1, 1]} : vector<5x8x128xf32> to vector<1x8x128xf32>
    %28 = vector.shape_cast %27 : vector<1x8x128xf32> to vector<8x128xf32>
    %c4 = arith.constant 4 : index
    %29 = memref.load %arg1[%c4] : memref<5xf32, #tpu.memory_space<smem>>
    %30 = vector.broadcast %29 : f32 to vector<8x128xf32>
    %31 = arith.mulf %28, %30 : vector<8x128xf32>
    %32 = arith.addf %26, %31 : vector<8x128xf32>
    %c0_4 = arith.constant 0 : index
    %33 = memref.load %arg3[%c0_4] : memref<2xf32, #tpu.memory_space<smem>>
    %34 = vector.broadcast %33 : f32 to vector<8x128xf32>
    %35 = arith.addf %32, %34 : vector<8x128xf32>
    %36 = math.tanh %35 : vector<8x128xf32>
    %37 = vector.extract_strided_slice %3 {offsets = [0, 0, 0], sizes = [1, 8, 128], strides = [1, 1, 1]} : vector<5x8x128xf32> to vector<1x8x128xf32>
    %38 = vector.shape_cast %37 : vector<1x8x128xf32> to vector<8x128xf32>
    %c0_5 = arith.constant 0 : index
    %39 = memref.load %arg2[%c0_5] : memref<5xf32, #tpu.memory_space<smem>>
    %40 = vector.broadcast %39 : f32 to vector<8x128xf32>
    %41 = arith.mulf %40, %36 : vector<8x128xf32>
    %42 = arith.addf %38, %41 : vector<8x128xf32>
    %c0_6 = arith.constant 0 : index
    %c0_7 = arith.constant 0 : index
    %c0_8 = arith.constant 0 : index
    %43 = vector.load %arg5[%c0_6, %c0_7, %c0_8] : memref<5x8x128xf32, #tpu.memory_space<vmem>>, vector<1x8x128xf32>
    %44 = vector.shape_cast %43 : vector<1x8x128xf32> to vector<8x128xf32>
    %45 = vector.shape_cast %42 : vector<8x128xf32> to vector<1x8x128xf32>
    tpu.vector_store %arg5[%c0_6, %c0_7, %c0_8], %45 {strides = array<i32>} : memref<5x8x128xf32, #tpu.memory_space<vmem>>, vector<1x8x128xf32>,
    %46 = vector.extract_strided_slice %3 {offsets = [1, 0, 0], sizes = [1, 8, 128], strides = [1, 1, 1]} : vector<5x8x128xf32> to vector<1x8x128xf32>
    %47 = vector.shape_cast %46 : vector<1x8x128xf32> to vector<8x128xf32>
    %c1_9 = arith.constant 1 : index
    %48 = memref.load %arg2[%c1_9] : memref<5xf32, #tpu.memory_space<smem>>
    %49 = vector.broadcast %48 : f32 to vector<8x128xf32>
    %50 = arith.mulf %49, %36 : vector<8x128xf32>
    %51 = arith.addf %47, %50 : vector<8x128xf32>
    %c1_10 = arith.constant 1 : index
    %c0_11 = arith.constant 0 : index
    %c0_12 = arith.constant 0 : index
    %52 = vector.load %arg5[%c1_10, %c0_11, %c0_12] : memref<5x8x128xf32, #tpu.memory_space<vmem>>, vector<1x8x128xf32>
    %53 = vector.shape_cast %52 : vector<1x8x128xf32> to vector<8x128xf32>
    %54 = vector.shape_cast %51 : vector<8x128xf32> to vector<1x8x128xf32>
    tpu.vector_store %arg5[%c1_10, %c0_11, %c0_12], %54 {strides = array<i32>} : memref<5x8x128xf32, #tpu.memory_space<vmem>>, vector<1x8x128xf32>,
    %55 = vector.extract_strided_slice %3 {offsets = [2, 0, 0], sizes = [1, 8, 128], strides = [1, 1, 1]} : vector<5x8x128xf32> to vector<1x8x128xf32>
    %56 = vector.shape_cast %55 : vector<1x8x128xf32> to vector<8x128xf32>
    %c2_13 = arith.constant 2 : index
    %57 = memref.load %arg2[%c2_13] : memref<5xf32, #tpu.memory_space<smem>>
    %58 = vector.broadcast %57 : f32 to vector<8x128xf32>
    %59 = arith.mulf %58, %36 : vector<8x128xf32>
    %60 = arith.addf %56, %59 : vector<8x128xf32>
    %c2_14 = arith.constant 2 : index
    %c0_15 = arith.constant 0 : index
    %c0_16 = arith.constant 0 : index
    %61 = vector.load %arg5[%c2_14, %c0_15, %c0_16] : memref<5x8x128xf32, #tpu.memory_space<vmem>>, vector<1x8x128xf32>
    %62 = vector.shape_cast %61 : vector<1x8x128xf32> to vector<8x128xf32>
    %63 = vector.shape_cast %60 : vector<8x128xf32> to vector<1x8x128xf32>
    tpu.vector_store %arg5[%c2_14, %c0_15, %c0_16], %63 {strides = array<i32>} : memref<5x8x128xf32, #tpu.memory_space<vmem>>, vector<1x8x128xf32>,
    %64 = vector.extract_strided_slice %3 {offsets = [3, 0, 0], sizes = [1, 8, 128], strides = [1, 1, 1]} : vector<5x8x128xf32> to vector<1x8x128xf32>
    %65 = vector.shape_cast %64 : vector<1x8x128xf32> to vector<8x128xf32>
    %c3_17 = arith.constant 3 : index
    %66 = memref.load %arg2[%c3_17] : memref<5xf32, #tpu.memory_space<smem>>
    %67 = vector.broadcast %66 : f32 to vector<8x128xf32>
    %68 = arith.mulf %67, %36 : vector<8x128xf32>
    %69 = arith.addf %65, %68 : vector<8x128xf32>
    %c3_18 = arith.constant 3 : index
    %c0_19 = arith.constant 0 : index
    %c0_20 = arith.constant 0 : index
    %70 = vector.load %arg5[%c3_18, %c0_19, %c0_20] : memref<5x8x128xf32, #tpu.memory_space<vmem>>, vector<1x8x128xf32>
    %71 = vector.shape_cast %70 : vector<1x8x128xf32> to vector<8x128xf32>
    %72 = vector.shape_cast %69 : vector<8x128xf32> to vector<1x8x128xf32>
    tpu.vector_store %arg5[%c3_18, %c0_19, %c0_20], %72 {strides = array<i32>} : memref<5x8x128xf32, #tpu.memory_space<vmem>>, vector<1x8x128xf32>,
    %73 = vector.extract_strided_slice %3 {offsets = [4, 0, 0], sizes = [1, 8, 128], strides = [1, 1, 1]} : vector<5x8x128xf32> to vector<1x8x128xf32>
    %74 = vector.shape_cast %73 : vector<1x8x128xf32> to vector<8x128xf32>
    %c4_21 = arith.constant 4 : index
    %75 = memref.load %arg2[%c4_21] : memref<5xf32, #tpu.memory_space<smem>>
    %76 = vector.broadcast %75 : f32 to vector<8x128xf32>
    %77 = arith.mulf %76, %36 : vector<8x128xf32>
    %78 = arith.addf %74, %77 : vector<8x128xf32>
    %c4_22 = arith.constant 4 : index
    %c0_23 = arith.constant 0 : index
    %c0_24 = arith.constant 0 : index
    %79 = vector.load %arg5[%c4_22, %c0_23, %c0_24] : memref<5x8x128xf32, #tpu.memory_space<vmem>>, vector<1x8x128xf32>
    %80 = vector.shape_cast %79 : vector<1x8x128xf32> to vector<8x128xf32>
    %81 = vector.shape_cast %78 : vector<8x128xf32> to vector<1x8x128xf32>
    tpu.vector_store %arg5[%c4_22, %c0_23, %c0_24], %81 {strides = array<i32>} : memref<5x8x128xf32, #tpu.memory_space<vmem>>, vector<1x8x128xf32>,
    %82 = arith.mulf %36, %36 : vector<8x128xf32>
    %cst = arith.constant 1.000000e+00 : f32
    %83 = vector.broadcast %cst : f32 to vector<8x128xf32>
    %84 = arith.subf %83, %82 : vector<8x128xf32>
    %c1_25 = arith.constant 1 : index
    %85 = memref.load %arg3[%c1_25] : memref<2xf32, #tpu.memory_space<smem>>
    %86 = vector.broadcast %85 : f32 to vector<8x128xf32>
    %87 = arith.mulf %84, %86 : vector<8x128xf32>
    %cst_26 = arith.constant 1.000000e+00 : f32
    %88 = vector.broadcast %cst_26 : f32 to vector<8x128xf32>
    %89 = arith.addf %88, %87 : vector<8x128xf32>
    %90 = math.absf %89 : vector<8x128xf32>
    %91 = math.log %90 : vector<8x128xf32>
    %92 = tpu.iota {dimensions = array<i32: 0>} : vector<8x128xi32>
    %93 = tpu.iota {dimensions = array<i32: 1>} : vector<8x128xi32>
    %c128_i32 = arith.constant 128 : i32
    %94 = vector.broadcast %c128_i32 : i32 to vector<8x128xi32>
    %95 = arith.muli %92, %94 : vector<8x128xi32>
    %c128_i32_27 = arith.constant 128 : i32
    %96 = arith.muli %arg0, %c128_i32_27 : i32
    %97 = vector.broadcast %96 : i32 to vector<8x128xi32>
    %98 = arith.addi %93, %97 : vector<8x128xi32>
    %99 = arith.addi %95, %98 : vector<8x128xi32>
    %c8_i32 = arith.constant 8 : i32
    %100 = vector.broadcast %c8_i32 : i32 to vector<8x128xi32>
    %101 = arith.cmpi slt, %99, %100 : vector<8x128xi32>
    %cst_28 = arith.constant 0.000000e+00 : f32
    %102 = vector.broadcast %cst_28 : f32 to vector<8x128xf32>
    %103 = arith.select %101, %91, %102 : vector<8x128xi1>, vector<8x128xf32>
    %c0_29 = arith.constant 0 : index
    %c0_30 = arith.constant 0 : index
    %104 = vector.load %arg6[%c0_29, %c0_30] : memref<1x1xf32, #tpu.memory_space<vmem>>, vector<1x1xf32>
    %105 = vector.shape_cast %103 : vector<8x128xf32> to vector<1x8x128xf32>
    %cst_31 = arith.constant dense<0.000000e+00> : vector<1xf32>
    %106 = vector.multi_reduction <add>, %105, %cst_31 [1, 2] : vector<1x8x128xf32> to vector<1xf32>
    %107 = vector.shape_cast %106 : vector<1xf32> to vector<1x1x1xf32>
    %108 = vector.extract %107[0, 0, 0] : f32 from vector<1x1x1xf32>
    %109 = vector.broadcast %108 : f32 to vector<1x1xf32>
    %110 = arith.addf %104, %109 : vector<1x1xf32>
    %c0_32 = arith.constant 0 : index
    %c0_33 = arith.constant 0 : index
    %111 = vector.load %arg6[%c0_32, %c0_33] : memref<1x1xf32, #tpu.memory_space<vmem>>, vector<1x1xf32>
    tpu.vector_store %arg6[%c0_32, %c0_33], %110 {strides = array<i32>} : memref<1x1xf32, #tpu.memory_space<vmem>>, vector<1x1xf32>,
    return
  }
  func.func @transform_0(%arg0: i32, %arg1: memref<5xf32, #tpu.memory_space<smem>>, %arg2: memref<5xf32, #tpu.memory_space<smem>>, %arg3: memref<2xf32, #tpu.memory_space<smem>>) -> (i32, i32, i32) {
    %c0_i32 = arith.constant 0 : i32
    %c0_i32_0 = arith.constant 0 : i32
    %c0_i32_1 = arith.constant 0 : i32
    return %c0_i32, %c0_i32_0, %arg0 : i32, i32, i32
  }
  func.func @transform_1(%arg0: i32, %arg1: memref<5xf32, #tpu.memory_space<smem>>, %arg2: memref<5xf32, #tpu.memory_space<smem>>, %arg3: memref<2xf32, #tpu.memory_space<smem>>) -> (i32, i32, i32) {
    %c0_i32 = arith.constant 0 : i32
    %c0_i32_0 = arith.constant 0 : i32
    %c0_i32_1 = arith.constant 0 : i32
    return %c0_i32, %c0_i32_0, %arg0 : i32, i32, i32
  }
  func.func @transform_2(%arg0: i32, %arg1: memref<5xf32, #tpu.memory_space<smem>>, %arg2: memref<5xf32, #tpu.memory_space<smem>>, %arg3: memref<2xf32, #tpu.memory_space<smem>>) -> (i32, i32) {
    %c0_i32 = arith.constant 0 : i32
    %c0_i32_0 = arith.constant 0 : i32
    %c0_i32_1 = arith.constant 0 : i32
    return %c0_i32, %c0_i32_0 : i32, i32
  }
}

</mosaic_0001>

<llo_original>
// kernel: tpu_custom_call.1
$region0: #{tpu_custom_call.1}
  #allocation0 [shape = 'u32[]', space=smem, size = 0x4, offset = 0x4, fixed_abs, tag = 'smem constant byte address 0x4 - core index']
  #allocation1 [shape = 'u32[144,128]{1,0:T(1,128)}', space=vmem, size = 0x12000, scoped, tag = 'internal scratch']
  #allocation2 [shape = 's32[1]{0}', space=sflag, size = 0x4, scoped, tag = 'scoped memory for tpu_custom_call.1']
  #allocation3 [shape = 'u8[512]{0}', space=smem, size = 0x200, scoped, tag = 'prefetched SMEM operand 0']
  #allocation4 [shape = 'u8[512]{0}', space=smem, size = 0x200, scoped, tag = 'prefetched SMEM operand 1']
  #allocation5 [shape = 'u8[512]{0}', space=smem, size = 0x200, scoped, tag = 'prefetched SMEM operand 2']
  %s0 = inlined_call_operand.hbm [shape: f32[5], index: 0, kind: input, shape index: {}]
  %s1 = inlined_call_operand.vmem [shape: f32[5], index: 1, kind: input, shape index: {}]
  %s2 = inlined_call_operand.vmem [shape: f32[2], index: 2, kind: input, shape index: {}]
  %s3 = inlined_call_operand.hbm [shape: f32[5,8,128], index: 3, kind: input, shape index: {}]
  %s4 = inlined_call_operand.hbm [shape: f32[5,8,128], index: 4, kind: output, shape index: {0}]
  %s5 = inlined_call_operand.hbm [shape: f32[1,1], index: 5, kind: output, shape index: {1}]
  %6 = xla_tuple %s4, %s5
  %s7 = sld [smem:[#allocation0]]
  $region30: #{tpu_custom_call.1} parent=0
    _
  %s9 = ssub.s32 1, %s7
  %s10 = scalar_select 0, %s9, %s7
  %12 = dma.hbm_to_smem %s0, 16, [#allocation3], [#allocation2]
  %s13 = sshll.u32 %s1, 4
  %s14 = int_to_ptr.vmem [resolvable:$true] %s13
  %16 = dma.vmem_to_smem %s14, 16, [#allocation4], [#allocation2]
  %s17 = sshll.u32 %s2, 4
  %s18 = int_to_ptr.vmem [resolvable:$true] %s17
  %20 = dma.vmem_to_smem %s18, 16, [#allocation5], [#allocation2]
  %21 = dma.done [#allocation2], 48
  %22 = sfence
  $region1: #{tpu_custom_call.1} parent=0
    #allocation6 [shape = 'u8[20480]{0}', space=vmem, size = 0x5000, scoped, tag = 'input window, operand 3, single buffered']
    #allocation7 [shape = 's32[1]{0}', space=sflag, size = 0x4, scoped, tag = 'scoped memory for tpu_custom_call.1']
    #allocation8 [shape = 's32[1]{0}', space=sflag, size = 0x4, scoped, tag = 'scoped memory for tpu_custom_call.1']
    #allocation9 [shape = 'u8[20480]{0}', space=vmem, size = 0x5000, scoped, tag = 'output window, operand 0, single buffered']
    #allocation10 [shape = 'u8[512]{0}', space=vmem, size = 0x400, scoped, tag = 'output window, operand 1, single buffered']
    #allocation11 [shape = 's32[1]{0}', space=sflag, size = 0x4, scoped, tag = 'scoped memory for tpu_custom_call.1']
    %23 = vsyncpa [#allocation7], 0
    %24 = vsyncpa [#allocation8], 0
    %25 = vsyncpa [#allocation11], 0
    // Predicated region
    $region2: #{tpu_custom_call.1} parent=1 // pred_check
      _
    $region3: #{tpu_custom_call.1} parent=1 // pred_check_branch
      %27 = sbr.rel (0) target = $region5
    $region4: #{tpu_custom_call.1} parent=1 // pred_region
      %s29 = ssub.s32 640, 640
      %30 = vsyncadd [#allocation7], %s29
      %s31 = sshll.u32 [#allocation6], 4
      %s32 = int_to_ptr.vmem [resolvable:$true] %s31
      %37 = dma.hbm_to_vmem [thread:$0]  %s3, 640, %s32, [#allocation7], 128, 128, 8
    $region5: #{tpu_custom_call.1} parent=1 // pred_fallthru
      _
    // Predicated region
    $region6: #{tpu_custom_call.1} parent=1 // pred_check
      _
    $region7: #{tpu_custom_call.1} parent=1 // pred_check_branch
      %39 = sbr.rel (0) target = $region9
    $region8: #{tpu_custom_call.1} parent=1 // pred_region
      %40 = dma.done [#allocation7], 640
    $region9: #{tpu_custom_call.1} parent=1 // pred_fallthru
      _
    %p41 = scmp.eq.s32.totalorder 0, 0
    // Predicated region
    $region10: #{tpu_custom_call.1} parent=1 // pred_check
      %p42 = pneg %p41
    $region11: #{tpu_custom_call.1} parent=1 // pred_check_branch
      %44 = sbr.rel (%p42) target = $region13
    $region12: #{tpu_custom_call.1} parent=1 // pred_region
      %vm45 = vcmask 0
      %46 = vst.msk [vmem:[#allocation10] sm:$0x1] %vm45, 0.0
    $region13: #{tpu_custom_call.1} parent=1 // pred_fallthru
      _
    %v47 = vld [vmem:[#allocation6] sm:$0xff]
    %v48 = vld [vmem:[#allocation6 + $0x8] sm:$0xff]
    %v49 = vld [vmem:[#allocation6 + $0x10] sm:$0xff]
    %v50 = vld [vmem:[#allocation6 + $0x18] sm:$0xff]
    %v51 = vld [vmem:[#allocation6 + $0x20] sm:$0xff]
    %s52 = sld [smem:[#allocation3]]
    %v53 = vstv %s52
    %v54 = vmul.f32 %v47, %v53
    %s55 = sld [smem:[#allocation3 + $0x1]]
    %v56 = vstv %s55
    %v57 = vmul.f32 %v48, %v56
    %v58 = vadd.f32 %v54, %v57
    %s59 = sld [smem:[#allocation3 + $0x2]]
    %v60 = vstv %s59
    %v61 = vmul.f32 %v49, %v60
    %v62 = vadd.f32 %v58, %v61
    %s63 = sld [smem:[#allocation3 + $0x3]]
    %v64 = vstv %s63
    %v65 = vmul.f32 %v50, %v64
    %v66 = vadd.f32 %v62, %v65
    %s67 = sld [smem:[#allocation3 + $0x4]]
    %v68 = vstv %s67
    %v69 = vmul.f32 %v51, %v68
    %v70 = vadd.f32 %v66, %v69
    %s71 = sld [smem:[#allocation5]]
    %v72 = vstv %s71
    %v73 = vadd.f32 %v70, %v72
    %v74 = vtanh.pop %v73
    %s75 = sld [smem:[#allocation4]]
    %v76 = vstv %s75
    %v77 = vmul.f32 %v76, %v74
    %v78 = vadd.f32 %v47, %v77
    %79 = vst [vmem:[#allocation9] sm:$0xff] %v78
    %s80 = sld [smem:[#allocation4 + $0x1]]
    %v81 = vstv %s80
    %v82 = vmul.f32 %v81, %v74
    %v83 = vadd.f32 %v48, %v82
    %s84 = scalar_lea.vmem [#allocation9], 8
    %85 = vst [vmem:[%s84] sm:$0xff] %v83
    %s86 = sld [smem:[#allocation4 + $0x2]]
    %v87 = vstv %s86
    %v88 = vmul.f32 %v87, %v74
    %v89 = vadd.f32 %v49, %v88
    %s90 = scalar_lea.vmem [#allocation9], 16
    %91 = vst [vmem:[%s90] sm:$0xff] %v89
    %s92 = sld [smem:[#allocation4 + $0x3]]
    %v93 = vstv %s92
    %v94 = vmul.f32 %v93, %v74
    %v95 = vadd.f32 %v50, %v94
    %s96 = scalar_lea.vmem [#allocation9], 24
    %97 = vst [vmem:[%s96] sm:$0xff] %v95
    %s98 = sld [smem:[#allocation4 + $0x4]]
    %v99 = vstv %s98
    %v100 = vmul.f32 %v99, %v74
    %v101 = vadd.f32 %v51, %v100
    %s102 = scalar_lea.vmem [#allocation9], 32
    %103 = vst [vmem:[%s102] sm:$0xff] %v101
    %v104 = vmul.f32 %v74, %v74
    %v105 = vsub.f32 1.0, %v104
    %s106 = sld [smem:[#allocation5 + $0x1]]
    %v107 = vstv %s106
    %v108 = vmul.f32 %v105, %v107
    %v109 = vadd.f32 %v108, 1.0
    %v110 = vand.u32 2147483647, %v109
    %v111 = vlog2.pop %v110
    %v112 = vmul.f32 %v111, 0.6931472
    %v113 = vlaneseq
    %v114 = vshrl.u32 %v113, 7
    %v115 = vlaneseq
    %v116 = vand.u32 %v115, 127
    %v117 = vmul.u32 %v114, 128
    %s118 = smul.u32 0, 128
    %v119 = vstv %s118
    %v120 = vadd.s32 %v116, %v119
    %v121 = vadd.s32 %v117, %v120
    %vm122 = vcmp.lt.s32.totalorder %v121, 8
    %v123 = vsel %vm122, %v112, 0.0
    %v124 = vld [vmem:[#allocation10] sm:$0x1]
    %125 = vadd.xlane.f32.xlu0 %v123
    %v126 = vpop.xlane.xlu0 %125
    %v127 = vrot.slane %v126, 4
    %v128 = vadd.f32 %v126, %v127
    %v129 = vrot.slane %v128, 2
    %v130 = vadd.f32 %v128, %v129
    %v131 = vrot.slane %v130, 1
    %v132 = vadd.f32 %v130, %v131
    %s133 = vtos %v132
    %v134 = vstv %s133
    %v135 = vadd.f32 %v124, %v134
    %vm136 = vcmask 0
    %137 = vst.msk [vmem:[#allocation10] sm:$0x1] %vm136, %v135
    // Predicated region
    $region14: #{tpu_custom_call.1} parent=1 // pred_check
      _
    $region15: #{tpu_custom_call.1} parent=1 // pred_check_branch
      %139 = sbr.rel (0) target = $region17
    $region16: #{tpu_custom_call.1} parent=1 // pred_region
      %s141 = ssub.s32 640, 640
      %142 = vsyncadd [#allocation8], %s141
      %s143 = sshll.u32 [#allocation9], 4
      %s144 = int_to_ptr.vmem [resolvable:$true] %s143
      %149 = dma.vmem_to_hbm [thread:$0]  %s144, 640, %s4, [#allocation8], 128, 128, 8
    $region17: #{tpu_custom_call.1} parent=1 // pred_fallthru
      _
    // Predicated region
    $region18: #{tpu_custom_call.1} parent=1 // pred_check
      _
    $region19: #{tpu_custom_call.1} parent=1 // pred_check_branch
      %151 = sbr.rel (0) target = $region21
    $region20: #{tpu_custom_call.1} parent=1 // pred_region
      %s153 = ssub.s32 16, 16
      %154 = vsyncadd [#allocation11], %s153
      %s156 = sshll.u32 [#allocation10], 4
      %s157 = int_to_ptr.vmem [resolvable:$true] %s156
      %159 = dma.vmem_to_hbm [thread:$0]  %s157, 16, %s5, [#allocation11]
    $region21: #{tpu_custom_call.1} parent=1 // pred_fallthru
      _
    // Predicated region
    $region22: #{tpu_custom_call.1} parent=1 // pred_check
      _
    $region23: #{tpu_custom_call.1} parent=1 // pred_check_branch
      %161 = sbr.rel (0) target = $region25
    $region24: #{tpu_custom_call.1} parent=1 // pred_region
      %162 = dma.done [#allocation8], 640
    $region25: #{tpu_custom_call.1} parent=1 // pred_fallthru
      _
    // Predicated region
    $region26: #{tpu_custom_call.1} parent=1 // pred_check
      _
    $region27: #{tpu_custom_call.1} parent=1 // pred_check_branch
      %164 = sbr.rel (0) target = $region29
    $region28: #{tpu_custom_call.1} parent=1 // pred_region
      %165 = dma.done [#allocation11], 16
    $region29: #{tpu_custom_call.1} parent=1 // pred_fallthru
      _
    %166 = vsyncpa [#allocation7], 1
    %167 = vsyncpa [#allocation8], 1
    %168 = vsyncpa [#allocation11], 1

</llo_original>
